<compile_context>
chip_gen: v7x
topology: tpu7x:2x2x1
jax: 0.10.0
libtpu: 0.0.40
codegen_flags: <defaults>
</compile_context>

<pallas_src>
import functools

import numpy as np
import jax
import jax.numpy as jnp
from jax.experimental import pallas as pl
from jax.experimental.pallas import tpu as pltpu

BN_EPS = 1e-5
NEG_SLOPE = 0.1
LANE = 128
SUBLANE = 8
MAX_M_TILE = 512            # rows per tile; multiple of 8, VMEM-safe on v5e/v6e/v7x


def _round_up(x, m):
    return (x + m - 1) // m * m


# ---------------------------------------------------------------------------
# Pallas kernels
# ---------------------------------------------------------------------------
def _stats_kernel(p_ref, w_ref, sum_ref, ssq_ref):
    """Pass 1: tiled (patches @ W) on the MXU, accumulate per-channel batch stats."""
    @pl.when(pl.program_id(0) == 0)
    def _init():
        sum_ref[...] = jnp.zeros_like(sum_ref)
        ssq_ref[...] = jnp.zeros_like(ssq_ref)

    y = jnp.dot(p_ref[...], w_ref[...], preferred_element_type=jnp.float32)
    sum_ref[...] += jnp.sum(y, axis=0, keepdims=True)
    ssq_ref[...] += jnp.sum(y * y, axis=0, keepdims=True)


def _bn_lrelu(y, s, ss, g, b, inv_m):
    # training-mode BatchNorm (biased var, E[y^2]-mean^2 form) + LeakyReLU(0.1), f32
    mean = s * inv_m
    var = ss * inv_m - mean * mean
    scale = g * jax.lax.rsqrt(var + BN_EPS)
    shift = b - mean * scale
    z = y * scale + shift
    return jnp.where(z >= 0, z, NEG_SLOPE * z)


def _norm_kernel(p_ref, w_ref, sum_ref, ssq_ref, g_ref, b_ref, o_ref, *, inv_m):
    """Pass 2: recompute tile matmul, normalize + LeakyReLU."""
    y = jnp.dot(p_ref[...], w_ref[...], preferred_element_type=jnp.float32)
    o_ref[...] = _bn_lrelu(y, sum_ref[...], ssq_ref[...], g_ref[...], b_ref[...],
                           inv_m)


def _norm_res_kernel(p_ref, w_ref, sum_ref, ssq_ref, g_ref, b_ref, r_ref, o_ref,
                     *, inv_m):
    """Pass 2 with the ResidualUnit's `x + conv` fused in."""
    y = jnp.dot(p_ref[...], w_ref[...], preferred_element_type=jnp.float32)
    o_ref[...] = r_ref[...] + _bn_lrelu(y, sum_ref[...], ssq_ref[...],
                                        g_ref[...], b_ref[...], inv_m)


# ---------------------------------------------------------------------------
# Plain-JAX glue: im2col patch extraction (slices / concat / reshape only)
# ---------------------------------------------------------------------------
def _im2col(x_nhwc, k, stride, pad):
    if pad > 0:
        x_nhwc = jnp.pad(x_nhwc, ((0, 0), (pad, pad), (pad, pad), (0, 0)))
    n, h, w, c = x_nhwc.shape
    ho = (h - k) // stride + 1
    wo = (w - k) // stride + 1
    if k == 1 and stride == 1:
        patches = x_nhwc                                   # 1x1 conv: no expansion
    else:
        cols = []
        for di in range(k):
            for dj in range(k):
                cols.append(
                    x_nhwc[:, di:di + stride * ho:stride,
                           dj:dj + stride * wo:stride, :])
        patches = jnp.concatenate(cols, axis=-1)           # (N, Ho, Wo, k*k*C)
    return patches.reshape(n * ho * wo, k * k * c), (n, ho, wo)


# ---------------------------------------------------------------------------
# One ConvolutionModule (conv -> BN(train stats) -> LeakyReLU), tiled & fused
# ---------------------------------------------------------------------------
def conv_bn_lrelu(x_nhwc, w_oihw, gamma, beta, *, stride, pad, residual=None):
    cout, cin, kh, kw = w_oihw.shape
    patches, (n, ho, wo) = _im2col(x_nhwc, kh, stride, pad)
    m, k = patches.shape

    # lane-dense padding of K / Cout; M padded to tile multiple
    k_pad = _round_up(k, LANE)
    c_pad = _round_up(cout, LANE)
    if m >= MAX_M_TILE:
        m_tile = MAX_M_TILE
        m_pad = _round_up(m, MAX_M_TILE)
    else:
        m_pad = _round_up(m, SUBLANE)
        m_tile = m_pad
    n_tiles = m_pad // m_tile

    # bf16 MXU operands (f32 accumulation); zero padding is exact for the matmul
    # and contributes 0 to the batch statistics (we divide by the true M below).
    patches = jnp.pad(patches, ((0, m_pad - m), (0, k_pad - k))).astype(jnp.bfloat16)
    wmat = jnp.transpose(w_oihw, (2, 3, 1, 0)).reshape(k, cout)   # (kh*kw*Cin, Cout)
    wmat = jnp.pad(wmat, ((0, k_pad - k), (0, c_pad - cout))).astype(jnp.bfloat16)
    g = jnp.pad(gamma.astype(jnp.float32), (0, c_pad - cout)).reshape(1, c_pad)
    b = jnp.pad(beta.astype(jnp.float32), (0, c_pad - cout)).reshape(1, c_pad)

    # explicit VMEM budget: double-buffered patch/out/residual tiles + weights
    est = (2 * m_tile * k_pad * 2          # patches tile (bf16), double-buffered
           + 2 * k_pad * c_pad * 2         # weight matrix (bf16)
           + 2 * m_tile * c_pad * 4        # output tile (f32), double-buffered
           + 2 * m_tile * c_pad * 4        # residual tile (f32), double-buffered
           + 16 * c_pad * 4)               # stats / gamma / beta
    vmem_limit = int(min(max(4 * est, 32 * 2**20), 48 * 2**20))

    # -------- pass 1: batch statistics, accumulated across M tiles --------
    sum_y, ssq_y = pl.pallas_call(
        _stats_kernel,
        out_shape=(jax.ShapeDtypeStruct((1, c_pad), jnp.float32),
                   jax.ShapeDtypeStruct((1, c_pad), jnp.float32)),
        grid=(n_tiles,),
        in_specs=[pl.BlockSpec((m_tile, k_pad), lambda i: (i, 0)),
                  pl.BlockSpec((k_pad, c_pad), lambda i: (0, 0))],
        out_specs=(pl.BlockSpec((1, c_pad), lambda i: (0, 0)),
                   pl.BlockSpec((1, c_pad), lambda i: (0, 0))),
        compiler_params=pltpu.CompilerParams(
            dimension_semantics=("arbitrary",),        # resident accumulator
            vmem_limit_bytes=vmem_limit),
    )(patches, wmat)

    # -------- pass 2: normalize + LeakyReLU (+ fused residual), parallel --------
    inv_m = float(1.0 / m)                            # true (unpadded) batch size
    if residual is None:
        kernel = functools.partial(_norm_kernel, inv_m=inv_m)
        extra_inputs = ()
        extra_specs = []
    else:
        r = residual.reshape(m, cout).astype(jnp.float32)
        r = jnp.pad(r, ((0, m_pad - m), (0, c_pad - cout)))
        kernel = functools.partial(_norm_res_kernel, inv_m=inv_m)
        extra_inputs = (r,)
        extra_specs = [pl.BlockSpec((m_tile, c_pad), lambda i: (i, 0))]

    out = pl.pallas_call(
        kernel,
        out_shape=jax.ShapeDtypeStruct((m_pad, c_pad), jnp.float32),
        grid=(n_tiles,),
        in_specs=[pl.BlockSpec((m_tile, k_pad), lambda i: (i, 0)),
                  pl.BlockSpec((k_pad, c_pad), lambda i: (0, 0)),
                  pl.BlockSpec((1, c_pad), lambda i: (0, 0)),
                  pl.BlockSpec((1, c_pad), lambda i: (0, 0)),
                  pl.BlockSpec((1, c_pad), lambda i: (0, 0)),
                  pl.BlockSpec((1, c_pad), lambda i: (0, 0))] + extra_specs,
        out_specs=pl.BlockSpec((m_tile, c_pad), lambda i: (i, 0)),
        compiler_params=pltpu.CompilerParams(
            dimension_semantics=("parallel",),         # shards across v7x's 2 TCs
            vmem_limit_bytes=vmem_limit),
    )(patches, wmat, sum_y, ssq_y, g, b, *extra_inputs)

    return out[:m, :cout].reshape(n, ho, wo, cout)


# ---------------------------------------------------------------------------
# Full ResidualBlockModule forward (NCHW in / NCHW out, like the torch module)
# ---------------------------------------------------------------------------
def residual_block_forward(x_nchw, w0, g0, b0, res_params):
    x = jnp.transpose(x_nchw, (0, 2, 3, 1))                 # NCHW -> NHWC
    # ZeroPad2d((left=1, right=0, top=1, bottom=0))
    x = jnp.pad(x, ((0, 0), (1, 0), (1, 0), (0, 0)))
    x = conv_bn_lrelu(x, w0, g0, b0, stride=2, pad=0)
    for (w1, g1, b1, w2, g2, b2) in res_params:
        h = conv_bn_lrelu(x, w1, g1, b1, stride=1, pad=0)
        x = conv_bn_lrelu(h, w2, g2, b2, stride=1, pad=1, residual=x)
    return jnp.transpose(x, (0, 3, 1, 2))                   # NHWC -> NCHW


# ---------------------------------------------------------------------------
# Pure-JAX reference (f32, HIGHEST precision) for the correctness check
# ---------------------------------------------------------------------------
def _ref_conv_bn_lrelu(x_nhwc, w_oihw, gamma, beta, stride, pad):
    y = jax.lax.conv_general_dilated(
        x_nhwc, jnp.transpose(w_oihw, (2, 3, 1, 0)),
        window_strides=(stride, stride),
        padding=((pad, pad), (pad, pad)),
        dimension_numbers=("NHWC", "HWIO", "NHWC"),
        precision=jax.lax.Precision.HIGHEST)
    mean = jnp.mean(y, axis=(0, 1, 2), keepdims=True)
    var = jnp.mean((y - mean) ** 2, axis=(0, 1, 2), keepdims=True)
    z = (y - mean) * jax.lax.rsqrt(var + BN_EPS) * gamma + beta
    return jnp.where(z >= 0, z, NEG_SLOPE * z)


def _ref_forward(x_nchw, w0, g0, b0, res_params):
    x = jnp.transpose(x_nchw, (0, 2, 3, 1))
    x = jnp.pad(x, ((0, 0), (1, 0), (1, 0), (0, 0)))
    x = _ref_conv_bn_lrelu(x, w0, g0, b0, 2, 0)
    for (w1, g1, b1, w2, g2, b2) in res_params:
        h = _ref_conv_bn_lrelu(x, w1, g1, b1, 1, 0)
        x = x + _ref_conv_bn_lrelu(h, w2, g2, b2, 1, 1)
    return jnp.transpose(x, (0, 3, 1, 2))


if __name__ == "__main__":
    key = jax.random.PRNGKey(0)
    N, C_in, H, W = 2, 8, 16, 16
    C_out, num_block = 16, 2

    keys = jax.random.split(key, 2 + 2 * num_block)
    x = jax.random.normal(keys[0], (N, C_in, H, W), dtype=jnp.float32)

    # parameter init mirroring the torch module:
    #   conv weights ~ N(0, 0.01), BN gamma=1 / beta=0 (fresh BatchNorm2d)
    w0 = 0.01 * jax.random.normal(keys[1], (C_out, C_in, 3, 3), dtype=jnp.float32)
    g0 = jnp.ones((C_out,), jnp.float32)
    b0 = jnp.zeros((C_out,), jnp.float32)

    res_params = []
    for i in range(num_block):
        w1 = 0.01 * jax.random.normal(keys[2 + 2 * i],
                                      (C_out // 2, C_out, 1, 1), dtype=jnp.float32)
        w2 = 0.01 * jax.random.normal(keys[3 + 2 * i],
                                      (C_out, C_out // 2, 3, 3), dtype=jnp.float32)
        res_params.append((w1, jnp.ones((C_out // 2,), jnp.float32),
                           jnp.zeros((C_out // 2,), jnp.float32),
                           w2, jnp.ones((C_out,), jnp.float32),
                           jnp.zeros((C_out,), jnp.float32)))

    out = jax.block_until_ready(residual_block_forward(x, w0, g0, b0, res_params))
    ref = jax.block_until_ready(_ref_forward(x, w0, g0, b0, res_params))

    assert out.shape == (N, C_out, 8, 8), out.shape
    # tolerance sized for bf16 MXU operands with f32 accumulation / f32 epilogue
    np.testing.assert_allclose(np.asarray(out), np.asarray(ref),
                               rtol=2e-2, atol=2e-2)
    print("KERNEL_OK")
</pallas_src>

<mosaic_0001>
module attributes {stable_mosaic.version = 11 : i64} {
  func.func @_stats_kernel(%arg0: i32, %arg1: memref<128x128xbf16, #tpu.memory_space<vmem>>, %arg2: memref<128x128xbf16, #tpu.memory_space<vmem>>, %arg3: memref<1x128xf32, #tpu.memory_space<vmem>>, %arg4: memref<1x128xf32, #tpu.memory_space<vmem>>) attributes {dimension_semantics = [#tpu.dimension_semantics<arbitrary>], iteration_bounds = array<i64: 1>, scalar_prefetch = 0 : i64, scratch_operands = 0 : i64, tpu.core_type = #tpu.core_type<tc>, window_params = [{transform_indices = @transform_0, window_bounds = array<i64: 128, 128>}, {pipeline_mode = #tpu.pipeline_mode<synchronous>, transform_indices = @transform_1, window_bounds = array<i64: 128, 128>}, {pipeline_mode = #tpu.pipeline_mode<synchronous>, transform_indices = @transform_2, window_bounds = array<i64: 1, 128>}, {pipeline_mode = #tpu.pipeline_mode<synchronous>, transform_indices = @transform_3, window_bounds = array<i64: 1, 128>}]} {
    %c0_i32 = arith.constant 0 : i32
    %0 = arith.cmpi eq, %arg0, %c0_i32 : i32
    %1 = arith.extui %0 : i1 to i32
    %c0_i32_0 = arith.constant 0 : i32
    %2 = arith.cmpi ne, %1, %c0_i32_0 : i32
    scf.if %2 {
      %cst_14 = arith.constant 0.000000e+00 : f32
      %17 = vector.broadcast %cst_14 : f32 to vector<1x128xf32>
      %c0_15 = arith.constant 0 : index
      %c0_16 = arith.constant 0 : index
      %18 = vector.load %arg3[%c0_15, %c0_16] : memref<1x128xf32, #tpu.memory_space<vmem>>, vector<1x128xf32>
      tpu.vector_store %arg3[%c0_15, %c0_16], %17 {strides = array<i32>} : memref<1x128xf32, #tpu.memory_space<vmem>>, vector<1x128xf32>,
      %cst_17 = arith.constant 0.000000e+00 : f32
      %19 = vector.broadcast %cst_17 : f32 to vector<1x128xf32>
      %c0_18 = arith.constant 0 : index
      %c0_19 = arith.constant 0 : index
      %20 = vector.load %arg4[%c0_18, %c0_19] : memref<1x128xf32, #tpu.memory_space<vmem>>, vector<1x128xf32>
      tpu.vector_store %arg4[%c0_18, %c0_19], %19 {strides = array<i32>} : memref<1x128xf32, #tpu.memory_space<vmem>>, vector<1x128xf32>,
    } else {
    }
    %c0 = arith.constant 0 : index
    %c0_1 = arith.constant 0 : index
    %3 = vector.load %arg1[%c0, %c0_1] : memref<128x128xbf16, #tpu.memory_space<vmem>>, vector<128x128xbf16>
    %c0_2 = arith.constant 0 : index
    %c0_3 = arith.constant 0 : index
    %4 = vector.load %arg2[%c0_2, %c0_3] : memref<128x128xbf16, #tpu.memory_space<vmem>>, vector<128x128xbf16>
    %cst = arith.constant dense<0.000000e+00> : vector<128x128xf32>
    %5 = tpu.matmul %3, %4, %cst {dimension_numbers = #tpu.dot_dimension_numbers<[1], [0], [0], [1], [0, 0, 1, 1], [], []>} : vector<128x128xbf16>, vector<128x128xbf16>, vector<128x128xf32> -> vector<128x128xf32>
    %c0_4 = arith.constant 0 : index
    %c0_5 = arith.constant 0 : index
    %6 = vector.load %arg3[%c0_4, %c0_5] : memref<1x128xf32, #tpu.memory_space<vmem>>, vector<1x128xf32>
    %cst_6 = arith.constant dense<0.000000e+00> : vector<128xf32>
    %7 = vector.multi_reduction <add>, %5, %cst_6 [0] : vector<128x128xf32> to vector<128xf32>
    %8 = vector.shape_cast %7 : vector<128xf32> to vector<1x128xf32>
    %9 = arith.addf %6, %8 : vector<1x128xf32>
    %c0_7 = arith.constant 0 : index
    %c0_8 = arith.constant 0 : index
    %10 = vector.load %arg3[%c0_7, %c0_8] : memref<1x128xf32, #tpu.memory_space<vmem>>, vector<1x128xf32>
    tpu.vector_store %arg3[%c0_7, %c0_8], %9 {strides = array<i32>} : memref<1x128xf32, #tpu.memory_space<vmem>>, vector<1x128xf32>,
    %c0_9 = arith.constant 0 : index
    %c0_10 = arith.constant 0 : index
    %11 = vector.load %arg4[%c0_9, %c0_10] : memref<1x128xf32, #tpu.memory_space<vmem>>, vector<1x128xf32>
    %12 = arith.mulf %5, %5 : vector<128x128xf32>
    %cst_11 = arith.constant dense<0.000000e+00> : vector<128xf32>
    %13 = vector.multi_reduction <add>, %12, %cst_11 [0] : vector<128x128xf32> to vector<128xf32>
    %14 = vector.shape_cast %13 : vector<128xf32> to vector<1x128xf32>
    %15 = arith.addf %11, %14 : vector<1x128xf32>
    %c0_12 = arith.constant 0 : index
    %c0_13 = arith.constant 0 : index
    %16 = vector.load %arg4[%c0_12, %c0_13] : memref<1x128xf32, #tpu.memory_space<vmem>>, vector<1x128xf32>
    tpu.vector_store %arg4[%c0_12, %c0_13], %15 {strides = array<i32>} : memref<1x128xf32, #tpu.memory_space<vmem>>, vector<1x128xf32>,
    return
  }
  func.func @transform_0(%arg0: i32) -> (i32, i32) {
    %c0_i32 = arith.constant 0 : i32
    %c0_i32_0 = arith.constant 0 : i32
    return %arg0, %c0_i32 : i32, i32
  }
  func.func @transform_1(%arg0: i32) -> (i32, i32) {
    %c0_i32 = arith.constant 0 : i32
    %c0_i32_0 = arith.constant 0 : i32
    %c0_i32_1 = arith.constant 0 : i32
    return %c0_i32, %c0_i32_0 : i32, i32
  }
  func.func @transform_2(%arg0: i32) -> (i32, i32) {
    %c0_i32 = arith.constant 0 : i32
    %c0_i32_0 = arith.constant 0 : i32
    %c0_i32_1 = arith.constant 0 : i32
    return %c0_i32, %c0_i32_0 : i32, i32
  }
  func.func @transform_3(%arg0: i32) -> (i32, i32) {
    %c0_i32 = arith.constant 0 : i32
    %c0_i32_0 = arith.constant 0 : i32
    %c0_i32_1 = arith.constant 0 : i32
    return %c0_i32, %c0_i32_0 : i32, i32
  }
}

</mosaic_0001>

<llo_original>
// kernel: tpu_custom_call.1
$region0: #{tpu_custom_call.1}
  #allocation0 [shape = 'u32[]', space=smem, size = 0x4, offset = 0x4, fixed_abs, tag = 'smem constant byte address 0x4 - core index']
  #allocation1 [shape = 'u32[144,128]{1,0:T(1,128)}', space=vmem, size = 0x12000, scoped, tag = 'internal scratch']
  %s0 = inlined_call_operand.hbm [shape: bf16[128,128], index: 0, kind: input, shape index: {}]
  %s1 = inlined_call_operand.hbm [shape: bf16[128,128], index: 1, kind: input, shape index: {}]
  %s2 = inlined_call_operand.hbm [shape: f32[1,128], index: 2, kind: output, shape index: {0}]
  %s3 = inlined_call_operand.hbm [shape: f32[1,128], index: 3, kind: output, shape index: {1}]
  %4 = xla_tuple %s2, %s3
  %s5 = sld [smem:[#allocation0]]
  $region38: #{tpu_custom_call.1} parent=0
    _
  %s7 = ssub.s32 1, %s5
  %s8 = scalar_select 0, %s7, %s5
  $region1: #{tpu_custom_call.1} parent=0
    #allocation2 [shape = 'u8[32768]{0}', space=vmem, size = 0x8000, scoped, tag = 'input window, operand 0, single buffered']
    #allocation3 [shape = 's32[1]{0}', space=sflag, size = 0x4, scoped, tag = 'scoped memory for tpu_custom_call.1']
    #allocation4 [shape = 's32[1]{0}', space=sflag, size = 0x4, scoped, tag = 'scoped memory for tpu_custom_call.1']
    #allocation5 [shape = 'u8[32768]{0}', space=vmem, size = 0x8000, scoped, tag = 'input window, operand 1, single buffered']
    #allocation6 [shape = 's32[1]{0}', space=sflag, size = 0x4, scoped, tag = 'scoped memory for tpu_custom_call.1']
    #allocation7 [shape = 'u8[512]{0}', space=vmem, size = 0x400, scoped, tag = 'output window, operand 0, single buffered']
    #allocation8 [shape = 'u8[512]{0}', space=vmem, size = 0x400, scoped, tag = 'output window, operand 1, single buffered']
    #allocation9 [shape = 's32[1]{0}', space=sflag, size = 0x4, scoped, tag = 'scoped memory for tpu_custom_call.1']
    %9 = vsyncpa [#allocation3], 0
    %10 = vsyncpa [#allocation6], 0
    %11 = vsyncpa [#allocation4], 0
    %12 = vsyncpa [#allocation9], 0
    // Predicated region
    $region2: #{tpu_custom_call.1} parent=1 // pred_check
      _
    $region3: #{tpu_custom_call.1} parent=1 // pred_check_branch
      %14 = sbr.rel (0) target = $region5
    $region4: #{tpu_custom_call.1} parent=1 // pred_region
      %s16 = ssub.s32 1024, 1024
      %17 = vsyncadd [#allocation3], %s16
      %s18 = sshll.u32 [#allocation2], 4
      %s19 = int_to_ptr.vmem [resolvable:$true] %s18
      %24 = dma.hbm_to_vmem [thread:$0]  %s0, 1024, %s19, [#allocation3], 64, 64, 4
    $region5: #{tpu_custom_call.1} parent=1 // pred_fallthru
      _
    // Predicated region
    $region6: #{tpu_custom_call.1} parent=1 // pred_check
      _
    $region7: #{tpu_custom_call.1} parent=1 // pred_check_branch
      %26 = sbr.rel (0) target = $region9
    $region8: #{tpu_custom_call.1} parent=1 // pred_region
      %s28 = ssub.s32 1024, 1024
      %29 = vsyncadd [#allocation6], %s28
      %s30 = sshll.u32 [#allocation5], 4
      %s31 = int_to_ptr.vmem [resolvable:$true] %s30
      %36 = dma.hbm_to_vmem [thread:$0]  %s1, 1024, %s31, [#allocation6], 64, 64, 4
    $region9: #{tpu_custom_call.1} parent=1 // pred_fallthru
      _
    // Predicated region
    $region10: #{tpu_custom_call.1} parent=1 // pred_check
      _
    $region11: #{tpu_custom_call.1} parent=1 // pred_check_branch
      %38 = sbr.rel (0) target = $region13
    $region12: #{tpu_custom_call.1} parent=1 // pred_region
      %39 = dma.done [#allocation3], 1024
    $region13: #{tpu_custom_call.1} parent=1 // pred_fallthru
      _
    // Predicated region
    $region14: #{tpu_custom_call.1} parent=1 // pred_check
      _
    $region15: #{tpu_custom_call.1} parent=1 // pred_check_branch
      %41 = sbr.rel (0) target = $region17
    $region16: #{tpu_custom_call.1} parent=1 // pred_region
      %42 = dma.done [#allocation6], 1024
    $region17: #{tpu_custom_call.1} parent=1 // pred_fallthru
      _
    %p44 = scmp.eq.s32.totalorder 0, 0
    // Predicated region
    $region18: #{tpu_custom_call.1} parent=1 // pred_check
      %p45 = pneg %p44
    $region19: #{tpu_custom_call.1} parent=1 // pred_check_branch
      %47 = sbr.rel (%p45) target = $region21
    $region20: #{tpu_custom_call.1} parent=1 // pred_region
      %48 = vst [vmem:[#allocation7] sm:$0x1] 0.0
      %49 = vst [vmem:[#allocation8] sm:$0x1] 0.0
    $region21: #{tpu_custom_call.1} parent=1 // pred_fallthru
      _
    %v50 = vld [vmem:[#allocation2] sm:$0xf]
    %v51 = vld [vmem:[#allocation2 + $0x4] sm:$0xf]
    %v52 = vld [vmem:[#allocation2 + $0x8] sm:$0xf]
    %v53 = vld [vmem:[#allocation2 + $0xc] sm:$0xf]
    %v54 = vld [vmem:[#allocation2 + $0x10] sm:$0xf]
    %v55 = vld [vmem:[#allocation2 + $0x14] sm:$0xf]
    %v56 = vld [vmem:[#allocation2 + $0x18] sm:$0xf]
    %v57 = vld [vmem:[#allocation2 + $0x1c] sm:$0xf]
    %v58 = vld [vmem:[#allocation2 + $0x20] sm:$0xf]
    %v59 = vld [vmem:[#allocation2 + $0x24] sm:$0xf]
    %v60 = vld [vmem:[#allocation2 + $0x28] sm:$0xf]
    %v61 = vld [vmem:[#allocation2 + $0x2c] sm:$0xf]
    %v62 = vld [vmem:[#allocation2 + $0x30] sm:$0xf]
    %v63 = vld [vmem:[#allocation2 + $0x34] sm:$0xf]
    %v64 = vld [vmem:[#allocation2 + $0x38] sm:$0xf]
    %v65 = vld [vmem:[#allocation2 + $0x3c] sm:$0xf]
    %v66 = vld [vmem:[#allocation5] sm:$0xf]
    %v67 = vld [vmem:[#allocation5 + $0x4] sm:$0xf]
    %v68 = vld [vmem:[#allocation5 + $0x8] sm:$0xf]
    %v69 = vld [vmem:[#allocation5 + $0xc] sm:$0xf]
    %v70 = vld [vmem:[#allocation5 + $0x10] sm:$0xf]
    %v71 = vld [vmem:[#allocation5 + $0x14] sm:$0xf]
    %v72 = vld [vmem:[#allocation5 + $0x18] sm:$0xf]
    %v73 = vld [vmem:[#allocation5 + $0x1c] sm:$0xf]
    %v74 = vld [vmem:[#allocation5 + $0x20] sm:$0xf]
    %v75 = vld [vmem:[#allocation5 + $0x24] sm:$0xf]
    %v76 = vld [vmem:[#allocation5 + $0x28] sm:$0xf]
    %v77 = vld [vmem:[#allocation5 + $0x2c] sm:$0xf]
    %v78 = vld [vmem:[#allocation5 + $0x30] sm:$0xf]
    %v79 = vld [vmem:[#allocation5 + $0x34] sm:$0xf]
    %v80 = vld [vmem:[#allocation5 + $0x38] sm:$0xf]
    %v81 = vld [vmem:[#allocation5 + $0x3c] sm:$0xf]
    %v98 = vunpack.c.l.b16 %v50
    %v99 = vunpack.c.l.b16 %v51
    %v100 = vunpack.c.l.b16 %v52
    %v101 = vunpack.c.l.b16 %v53
    %v102 = vunpack.c.l.b16 %v54
    %v103 = vunpack.c.l.b16 %v55
    %v104 = vunpack.c.l.b16 %v56
    %v105 = vunpack.c.l.b16 %v57
    %v106 = vunpack.c.l.b16 %v58
    %v107 = vunpack.c.l.b16 %v59
    %v108 = vunpack.c.l.b16 %v60
    %v109 = vunpack.c.l.b16 %v61
    %v110 = vunpack.c.l.b16 %v62
    %v111 = vunpack.c.l.b16 %v63
    %v112 = vunpack.c.l.b16 %v64
    %v113 = vunpack.c.l.b16 %v65
    %v114 = vpack.c.b16 %v99, %v98
    %v115 = vpack.c.b16 %v101, %v100
    %v116 = vpack.c.b16 %v103, %v102
    %v117 = vpack.c.b16 %v105, %v104
    %v118 = vpack.c.b16 %v107, %v106
    %v119 = vpack.c.b16 %v109, %v108
    %v120 = vpack.c.b16 %v111, %v110
    %v121 = vpack.c.b16 %v113, %v112
    %v146 = vunpack.c.l.b16 %v66
    %v147 = vunpack.c.l.b16 %v67
    %v148 = vunpack.c.l.b16 %v68
    %v149 = vunpack.c.l.b16 %v69
    %v150 = vunpack.c.l.b16 %v70
    %v151 = vunpack.c.l.b16 %v71
    %v152 = vunpack.c.l.b16 %v72
    %v153 = vunpack.c.l.b16 %v73
    %v154 = vunpack.c.l.b16 %v74
    %v155 = vunpack.c.l.b16 %v75
    %v156 = vunpack.c.l.b16 %v76
    %v157 = vunpack.c.l.b16 %v77
    %v158 = vunpack.c.l.b16 %v78
    %v159 = vunpack.c.l.b16 %v79
    %v160 = vunpack.c.l.b16 %v80
    %v161 = vunpack.c.l.b16 %v81
    %v162 = vpack.c.b16 %v147, %v146
    %v163 = vpack.c.b16 %v149, %v148
    %v164 = vpack.c.b16 %v151, %v150
    %v165 = vpack.c.b16 %v153, %v152
    %v166 = vpack.c.b16 %v155, %v154
    %v167 = vpack.c.b16 %v157, %v156
    %v168 = vpack.c.b16 %v159, %v158
    %v169 = vpack.c.b16 %v161, %v160
    %178 = vmatprep.subr.bf16.mxu0 0
    %179 = vmatpush1.bf16.msra.mxu0 %v162
    %180 = vmatprep.subr.bf16.mxu0 0
    %181 = vmatpush1.bf16.msra.mxu0 %v163
    %182 = vmatprep.subr.bf16.mxu0 0
    %183 = vmatpush1.bf16.msra.mxu0 %v164
    %184 = vmatprep.subr.bf16.mxu0 0
    %185 = vmatpush1.bf16.msra.mxu0 %v165
    %186 = vmatprep.subr.bf16.mxu0 0
    %187 = vmatpush1.bf16.msra.mxu0 %v166
    %188 = vmatprep.subr.bf16.mxu0 0
    %189 = vmatpush1.bf16.msra.mxu0 %v167
    %190 = vmatprep.subr.bf16.mxu0 0
    %191 = vmatpush1.bf16.msra.mxu0 %v168
    %192 = vmatprep.subr.bf16.mxu0 0
    %193 = vmatpush1.bf16.msra.mxu0 %v169
    %194 = vmatprep.subr.bf16.mxu0 0
    %195 = vmatpush1.bf16.msra.mxu0 0
    %196 = vmatprep.subr.bf16.mxu0 0
    %197 = vmatpush1.bf16.msra.mxu0 0
    %198 = vmatprep.subr.bf16.mxu0 0
    %199 = vmatpush1.bf16.msra.mxu0 0
    %200 = vmatprep.subr.bf16.mxu0 0
    %201 = vmatpush1.bf16.msra.mxu0 0
    %202 = vmatprep.subr.bf16.mxu0 0
    %203 = vmatpush1.bf16.msra.mxu0 0
    %204 = vmatprep.subr.bf16.mxu0 0
    %205 = vmatpush1.bf16.msra.mxu0 0
    %206 = vmatprep.subr.bf16.mxu0 0
    %207 = vmatpush1.bf16.msra.mxu0 0
    %208 = vmatprep.subr.bf16.mxu0 0
    %209 = vmatpush1.bf16.msra.mxu0 0
    %210 = vmatprep.mubr.bf16.mxu0 0
    %211 = vmatmul.mubr.bf16.gmra.mrb[0].mxu0 %v114
    %v212 = vpop.f32.mrb[0].mxu0
    %v213 = vadd.f32 0.0, %v212
    %v214 = vpop.f32.mrb[0].mxu0
    %v215 = vpop.f32.mrb[0].mxu0
    %v216 = vadd.f32 0.0, %v215
    %v217 = vpop.f32.mrb[0].mxu0
    %218 = vmatprep.mubr.bf16.mxu0 0
    %219 = vmatmul.mubr.bf16.gmra.mrb[0].mxu0 %v115
    %v220 = vpop.f32.mrb[0].mxu0
    %v221 = vadd.f32 0.0, %v220
    %v222 = vpop.f32.mrb[0].mxu0
    %v223 = vpop.f32.mrb[0].mxu0
    %v224 = vadd.f32 0.0, %v223
    %v225 = vpop.f32.mrb[0].mxu0
    %226 = vmatprep.mubr.bf16.mxu0 0
    %227 = vmatmul.mubr.bf16.gmra.mrb[0].mxu0 %v116
    %v228 = vpop.f32.mrb[0].mxu0
    %v229 = vadd.f32 0.0, %v228
    %v230 = vpop.f32.mrb[0].mxu0
    %v231 = vpop.f32.mrb[0].mxu0
    %v232 = vadd.f32 0.0, %v231
    %v233 = vpop.f32.mrb[0].mxu0
    %234 = vmatprep.mubr.bf16.mxu0 0
    %235 = vmatmul.mubr.bf16.gmra.mrb[0].mxu0 %v117
    %v236 = vpop.f32.mrb[0].mxu0
    %v237 = vadd.f32 0.0, %v236
    %v238 = vpop.f32.mrb[0].mxu0
    %v239 = vpop.f32.mrb[0].mxu0
    %v240 = vadd.f32 0.0, %v239
    %v241 = vpop.f32.mrb[0].mxu0
    %242 = vmatprep.mubr.bf16.mxu0 0
    %243 = vmatmul.mubr.bf16.gmra.mrb[0].mxu0 %v118
    %v244 = vpop.f32.mrb[0].mxu0
    %v245 = vadd.f32 0.0, %v244
    %v246 = vpop.f32.mrb[0].mxu0
    %v247 = vpop.f32.mrb[0].mxu0
    %v248 = vadd.f32 0.0, %v247
    %v249 = vpop.f32.mrb[0].mxu0
    %250 = vmatprep.mubr.bf16.mxu0 0
    %251 = vmatmul.mubr.bf16.gmra.mrb[0].mxu0 %v119
    %v252 = vpop.f32.mrb[0].mxu0
    %v253 = vadd.f32 0.0, %v252
    %v254 = vpop.f32.mrb[0].mxu0
    %v255 = vpop.f32.mrb[0].mxu0
    %v256 = vadd.f32 0.0, %v255
    %v257 = vpop.f32.mrb[0].mxu0
    %258 = vmatprep.mubr.bf16.mxu0 0
    %259 = vmatmul.mubr.bf16.gmra.mrb[0].mxu0 %v120
    %v260 = vpop.f32.mrb[0].mxu0
    %v261 = vadd.f32 0.0, %v260
    %v262 = vpop.f32.mrb[0].mxu0
    %v263 = vpop.f32.mrb[0].mxu0
    %v264 = vadd.f32 0.0, %v263
    %v265 = vpop.f32.mrb[0].mxu0
    %266 = vmatprep.mubr.bf16.mxu0 0
    %267 = vmatmul.mubr.bf16.gmra.mrb[0].mxu0 %v121
    %v268 = vpop.f32.mrb[0].mxu0
    %v269 = vadd.f32 0.0, %v268
    %v270 = vpop.f32.mrb[0].mxu0
    %v271 = vpop.f32.mrb[0].mxu0
    %v272 = vadd.f32 0.0, %v271
    %v273 = vpop.f32.mrb[0].mxu0
    %274 = vdwg.mxu0
    %v275 = vld [vmem:[#allocation7] sm:$0x1]
    %v276 = vadd.f32 %v213, %v216
    %v277 = vadd.f32 %v276, %v221
    %v278 = vadd.f32 %v277, %v224
    %v279 = vadd.f32 %v278, %v229
    %v280 = vadd.f32 %v279, %v232
    %v281 = vadd.f32 %v280, %v237
    %v282 = vadd.f32 %v281, %v240
    %v283 = vadd.f32 %v282, %v245
    %v284 = vadd.f32 %v283, %v248
    %v285 = vadd.f32 %v284, %v253
    %v286 = vadd.f32 %v285, %v256
    %v287 = vadd.f32 %v286, %v261
    %v288 = vadd.f32 %v287, %v264
    %v289 = vadd.f32 %v288, %v269
    %v290 = vadd.f32 %v289, %v272
    %v291 = vrot.slane %v290, 4
    %v292 = vadd.f32 %v290, %v291
    %v293 = vrot.slane %v292, 2
    %v294 = vadd.f32 %v292, %v293
    %v295 = vrot.slane %v294, 1
    %v296 = vadd.f32 %v294, %v295
    %v297 = vadd.f32 %v275, %v296
    %298 = vst [vmem:[#allocation7] sm:$0x1] %v297
    %v299 = vld [vmem:[#allocation8] sm:$0x1]
    %v300 = vmul.f32 %v213, %v213
    %v301 = vmul.f32 %v216, %v216
    %v302 = vmul.f32 %v221, %v221
    %v303 = vmul.f32 %v224, %v224
    %v304 = vmul.f32 %v229, %v229
    %v305 = vmul.f32 %v232, %v232
    %v306 = vmul.f32 %v237, %v237
    %v307 = vmul.f32 %v240, %v240
    %v308 = vmul.f32 %v245, %v245
    %v309 = vmul.f32 %v248, %v248
    %v310 = vmul.f32 %v253, %v253
    %v311 = vmul.f32 %v256, %v256
    %v312 = vmul.f32 %v261, %v261
    %v313 = vmul.f32 %v264, %v264
    %v314 = vmul.f32 %v269, %v269
    %v315 = vmul.f32 %v272, %v272
    %v316 = vadd.f32 %v300, %v301
    %v317 = vadd.f32 %v316, %v302
    %v318 = vadd.f32 %v317, %v303
    %v319 = vadd.f32 %v318, %v304
    %v320 = vadd.f32 %v319, %v305
    %v321 = vadd.f32 %v320, %v306
    %v322 = vadd.f32 %v321, %v307
    %v323 = vadd.f32 %v322, %v308
    %v324 = vadd.f32 %v323, %v309
    %v325 = vadd.f32 %v324, %v310
    %v326 = vadd.f32 %v325, %v311
    %v327 = vadd.f32 %v326, %v312
    %v328 = vadd.f32 %v327, %v313
    %v329 = vadd.f32 %v328, %v314
    %v330 = vadd.f32 %v329, %v315
    %v331 = vrot.slane %v330, 4
    %v332 = vadd.f32 %v330, %v331
    %v333 = vrot.slane %v332, 2
    %v334 = vadd.f32 %v332, %v333
    %v335 = vrot.slane %v334, 1
    %v336 = vadd.f32 %v334, %v335
    %v337 = vadd.f32 %v299, %v336
    %338 = vst [vmem:[#allocation8] sm:$0x1] %v337
    // Predicated region
    $region22: #{tpu_custom_call.1} parent=1 // pred_check
      _
    $region23: #{tpu_custom_call.1} parent=1 // pred_check_branch
      %340 = sbr.rel (0) target = $region25
    $region24: #{tpu_custom_call.1} parent=1 // pred_region
      %s342 = ssub.s32 16, 16
      %343 = vsyncadd [#allocation4], %s342
      %s345 = sshll.u32 [#allocation7], 4
      %s346 = int_to_ptr.vmem [resolvable:$true] %s345
      %348 = dma.vmem_to_hbm [thread:$0]  %s346, 16, %s2, [#allocation4]
    $region25: #{tpu_custom_call.1} parent=1 // pred_fallthru
      _
    // Predicated region
    $region26: #{tpu_custom_call.1} parent=1 // pred_check
      _
    $region27: #{tpu_custom_call.1} parent=1 // pred_check_branch
      %350 = sbr.rel (0) target = $region29
    $region28: #{tpu_custom_call.1} parent=1 // pred_region
      %s352 = ssub.s32 16, 16
      %353 = vsyncadd [#allocation9], %s352
      %s355 = sshll.u32 [#allocation8], 4
      %s356 = int_to_ptr.vmem [resolvable:$true] %s355
      %358 = dma.vmem_to_hbm [thread:$0]  %s356, 16, %s3, [#allocation9]
    $region29: #{tpu_custom_call.1} parent=1 // pred_fallthru
      _
    // Predicated region
    $region30: #{tpu_custom_call.1} parent=1 // pred_check
      _
    $region31: #{tpu_custom_call.1} parent=1 // pred_check_branch
      %360 = sbr.rel (0) target = $region33
    $region32: #{tpu_custom_call.1} parent=1 // pred_region
      %361 = dma.done [#allocation4], 16
    $region33: #{tpu_custom_call.1} parent=1 // pred_fallthru
      _
    // Predicated region
    $region34: #{tpu_custom_call.1} parent=1 // pred_check
      _
    $region35: #{tpu_custom_call.1} parent=1 // pred_check_branch
      %363 = sbr.rel (0) target = $region37
    $region36: #{tpu_custom_call.1} parent=1 // pred_region
      %364 = dma.done [#allocation9], 16
    $region37: #{tpu_custom_call.1} parent=1 // pred_fallthru
      _
    %365 = vsyncpa [#allocation3], 1
    %366 = vsyncpa [#allocation6], 1
    %367 = vsyncpa [#allocation4], 1
    %368 = vsyncpa [#allocation9], 1

</llo_original>
